<compile_context>
chip_gen: v6e
topology: v6e:2x2x1
jax: 0.10.0
libtpu: 0.0.40
codegen_flags: <defaults>
</compile_context>

<pallas_src>
import jax
import jax.numpy as jnp
from jax.experimental import pallas as pl
from jax.experimental.pallas import tpu as pltpu

HIDDEN = 512


def prior_kernel(x_ref, w1_ref, b1_ref, wh_ref, bh_ref, eps_ref, out_ref):
    """Fused Prior forward: hidden MLP + packed (mu|logvar) head + reparam.

    Writes a single lane-packed block out_ref = [mu | logvar | z] of width 3*Z.
    """
    Z = eps_ref.shape[-1]

    x = x_ref[...]
    h = jnp.dot(x, w1_ref[...], preferred_element_type=jnp.float32) + b1_ref[...]
    h = jnp.maximum(h, 0.0)                                     # ReLU

    # One MXU pass produces [mu | logvar] packed along lanes.
    heads = jnp.dot(h, wh_ref[...], preferred_element_type=jnp.float32) + bh_ref[...]
    mu = heads[:, :Z]
    lv = heads[:, Z:]

    std = jnp.exp(0.5 * lv)                                     # logvar.mul(0.5).exp_()
    z = eps_ref[...] * std + mu                                 # eps * std + mu

    # Single dense full-block store: [mu | logvar | z].
    out_ref[...] = jnp.concatenate([heads, z], axis=-1)


def _round_up(n, m):
    return ((n + m - 1) // m) * m


def _select_batch_tile(B, input_size, z_dim, pipeline_budget_bytes=16 * 1024 * 1024):
    """Pick one fixed large batch tile; pl.cdiv grid + masking handle the ragged edge."""
    # Per-row VMEM bytes (f32): double-buffered x / eps / packed-output streams
    # plus the h and heads/z temporaries live during compute.
    per_row = 4 * (2 * input_size + 2 * z_dim + 2 * 3 * z_dim + HIDDEN + 3 * z_dim)
    tb = pipeline_budget_bytes // max(per_row, 1)
    tb = max(8, min(1024, (tb // 8) * 8))
    # v7x megacore: keep at least 2 grid steps so both TensorCores get work.
    if B >= 16:
        tb = min(tb, max(8, _round_up((B + 1) // 2, 8)))
    if tb >= B:
        return B          # one full-batch tile (block dim == array dim is legal)
    return tb


def _vmem_limit_bytes(tb, input_size, z_dim):
    weights = 4 * (input_size * HIDDEN + HIDDEN + HIDDEN * 2 * z_dim + 2 * z_dim)
    streams = 2 * 4 * tb * (input_size + z_dim + 3 * z_dim)     # double-buffered x / eps / out
    temps = 4 * tb * (HIDDEN + 3 * z_dim)                       # h + heads/z temporaries
    # Assume worst-case double-buffered weights (covers the fallback path) + headroom.
    need = int((2 * weights + streams + temps) * 1.5)
    return max(min(need, 64 * 1024 * 1024), 16 * 1024 * 1024)


def init_params(key, input_size, z_dim):
    k1, k2, k3, k4, k5, k6 = jax.random.split(key, 6)

    # Deterministic synthetic init (PyTorch-Linear-like uniform scaling).
    def u(k, shape, fan_in):
        bound = 1.0 / jnp.sqrt(fan_in)
        return jax.random.uniform(k, shape, jnp.float32, -bound, bound)

    wmu = u(k3, (HIDDEN, z_dim), HIDDEN)
    wlv = u(k5, (HIDDEN, z_dim), HIDDEN)
    bmu = u(k4, (1, z_dim), HIDDEN)
    blv = u(k6, (1, z_dim), HIDDEN)
    return {
        "w1": u(k1, (input_size, HIDDEN), input_size),
        "b1": u(k2, (1, HIDDEN), input_size),
        # Heads packed offline: one [HIDDEN, 2*Z] MXU pass inside the kernel.
        "w_heads": jnp.concatenate([wmu, wlv], axis=1),
        "b_heads": jnp.concatenate([bmu, blv], axis=1),
    }


def prior_forward(x, params, eps):
    B, input_size = x.shape
    Z = eps.shape[-1]
    tb = _select_batch_tile(B, input_size, Z)
    grid = (pl.cdiv(B, tb),)

    flops = 2 * B * input_size * HIDDEN + 2 * B * HIDDEN * (2 * Z) + 6 * B * Z
    bytes_accessed = 4 * (B * input_size + input_size * HIDDEN + HIDDEN
                          + HIDDEN * 2 * Z + 2 * Z + B * Z      # inputs + weights + eps
                          + B * 3 * Z)                          # packed output [mu|logvar|z]

    def call(single_buffer_weights):
        if single_buffer_weights:
            # Constant index_map -> these blocks never change; 1 buffer halves
            # their VMEM footprint (w1 is the big one), freeing room for tiles.
            resident = dict(pipeline_mode=pl.Buffered(1))
        else:
            resident = {}
        return pl.pallas_call(
            prior_kernel,
            out_shape=jax.ShapeDtypeStruct((B, 3 * Z), jnp.float32),
            grid=grid,
            in_specs=[
                pl.BlockSpec((tb, input_size), lambda i: (i, 0)),                  # x       (batch-tiled)
                pl.BlockSpec((input_size, HIDDEN), lambda i: (0, 0), **resident),  # w1      (resident)
                pl.BlockSpec((1, HIDDEN), lambda i: (0, 0), **resident),           # b1      (resident)
                pl.BlockSpec((HIDDEN, 2 * Z), lambda i: (0, 0), **resident),       # w_heads (resident)
                pl.BlockSpec((1, 2 * Z), lambda i: (0, 0), **resident),            # b_heads (resident)
                pl.BlockSpec((tb, Z), lambda i: (i, 0)),                           # eps     (batch-tiled)
            ],
            out_specs=pl.BlockSpec((tb, 3 * Z), lambda i: (i, 0)),                 # [mu|logvar|z]
            compiler_params=pltpu.CompilerParams(
                dimension_semantics=("parallel",),
                vmem_limit_bytes=_vmem_limit_bytes(tb, input_size, Z)),
            cost_estimate=pl.CostEstimate(
                flops=flops, transcendentals=B * Z, bytes_accessed=bytes_accessed),
        )(x, params["w1"], params["b1"], params["w_heads"], params["b_heads"], eps)

    try:
        packed = call(True)
    except Exception:
        # pipeline_mode=pl.Buffered(1) not supported by this Pallas/Mosaic build;
        # fall back to default double-buffered resident weights (still correct).
        packed = call(False)

    mu = packed[:, :Z]
    lv = packed[:, Z:2 * Z]
    z = packed[:, 2 * Z:]
    return z, mu, lv


def prior_ref(x, params, eps):
    Z = eps.shape[-1]
    h = jnp.maximum(x @ params["w1"] + params["b1"], 0.0)
    heads = h @ params["w_heads"] + params["b_heads"]
    mu = heads[:, :Z]
    lv = heads[:, Z:]
    z = eps * jnp.exp(0.5 * lv) + mu
    return z, mu, lv


if __name__ == "__main__":
    key = jax.random.PRNGKey(0)
    kx, keps, kp, kx2, keps2 = jax.random.split(key, 5)

    input_size = 32
    z_dim = 16
    params = init_params(kp, input_size, z_dim)

    # --- aligned small batch ---
    B = 8
    x = jax.random.normal(kx, (B, input_size), jnp.float32)
    # eps is the N(0,1) noise of the reparameterization trick; generated
    # deterministically here and fed to the kernel so the result is exactly
    # checkable against a pure-JAX reference.
    # TODO(synk): optionally sample eps in-kernel (pltpu.prng_seed +
    # pltpu.stateful_normal) to mirror the module's internal .normal_() call
    # and drop the eps HBM stream (changes the RNG stream vs. this reference).
    eps = jax.random.normal(keps, (B, z_dim), jnp.float32)

    z, mu, lv = prior_forward(x, params, eps)
    jax.block_until_ready((z, mu, lv))
    zr, mur, lvr = prior_ref(x, params, eps)
    assert jnp.allclose(z, zr, atol=1e-5), "z mismatch"
    assert jnp.allclose(mu, mur, atol=1e-5), "mu mismatch"
    assert jnp.allclose(lv, lvr, atol=1e-5), "logvar mismatch"

    # --- ragged batch: exercises pl.cdiv grid (2 steps, masked last block) ---
    B2 = 20
    x2 = jax.random.normal(kx2, (B2, input_size), jnp.float32)
    eps2 = jax.random.normal(keps2, (B2, z_dim), jnp.float32)
    z2, mu2, lv2 = prior_forward(x2, params, eps2)
    jax.block_until_ready((z2, mu2, lv2))
    zr2, mur2, lvr2 = prior_ref(x2, params, eps2)
    assert jnp.allclose(z2, zr2, atol=1e-5), "z mismatch (ragged batch)"
    assert jnp.allclose(mu2, mur2, atol=1e-5), "mu mismatch (ragged batch)"
    assert jnp.allclose(lv2, lvr2, atol=1e-5), "logvar mismatch (ragged batch)"

    print("KERNEL_OK")
</pallas_src>

<mosaic_0001>
module attributes {stable_mosaic.version = 11 : i64} {
  func.func @prior_kernel(%arg0: i32, %arg1: memref<8x32xf32, #tpu.memory_space<vmem>>, %arg2: memref<32x512xf32, #tpu.memory_space<vmem>>, %arg3: memref<1x512xf32, #tpu.memory_space<vmem>>, %arg4: memref<512x32xf32, #tpu.memory_space<vmem>>, %arg5: memref<1x32xf32, #tpu.memory_space<vmem>>, %arg6: memref<8x16xf32, #tpu.memory_space<vmem>>, %arg7: memref<8x48xf32, #tpu.memory_space<vmem>>) attributes {dimension_semantics = [#tpu.dimension_semantics<parallel>], iteration_bounds = array<i64: 1>, scalar_prefetch = 0 : i64, scratch_operands = 0 : i64, tpu.core_type = #tpu.core_type<tc>, window_params = [{transform_indices = @transform_0, window_bounds = array<i64: 8, 32>}, {pipeline_mode = #tpu.pipeline_mode<synchronous>, transform_indices = @transform_1, window_bounds = array<i64: 32, 512>}, {pipeline_mode = #tpu.pipeline_mode<synchronous>, transform_indices = @transform_2, window_bounds = array<i64: 1, 512>}, {pipeline_mode = #tpu.pipeline_mode<synchronous>, transform_indices = @transform_3, window_bounds = array<i64: 512, 32>}, {pipeline_mode = #tpu.pipeline_mode<synchronous>, transform_indices = @transform_4, window_bounds = array<i64: 1, 32>}, {transform_indices = @transform_5, window_bounds = array<i64: 8, 16>}, {transform_indices = @transform_6, window_bounds = array<i64: 8, 48>}]} {
    %c0 = arith.constant 0 : index
    %c0_0 = arith.constant 0 : index
    %0 = vector.load %arg1[%c0, %c0_0] : memref<8x32xf32, #tpu.memory_space<vmem>>, vector<8x32xf32>
    %c0_1 = arith.constant 0 : index
    %c0_2 = arith.constant 0 : index
    %1 = vector.load %arg2[%c0_1, %c0_2] : memref<32x512xf32, #tpu.memory_space<vmem>>, vector<32x512xf32>
    %cst = arith.constant dense<0.000000e+00> : vector<8x512xf32>
    %2 = tpu.matmul %0, %1, %cst {dimension_numbers = #tpu.dot_dimension_numbers<[1], [0], [0], [1], [0, 0, 1, 1], [], []>} : vector<8x32xf32>, vector<32x512xf32>, vector<8x512xf32> -> vector<8x512xf32>
    %c0_3 = arith.constant 0 : index
    %c0_4 = arith.constant 0 : index
    %3 = vector.load %arg3[%c0_3, %c0_4] : memref<1x512xf32, #tpu.memory_space<vmem>>, vector<1x512xf32>
    %4 = vector.broadcast %3 : vector<1x512xf32> to vector<8x512xf32>
    %5 = arith.addf %2, %4 : vector<8x512xf32>
    %cst_5 = arith.constant 0.000000e+00 : f32
    %6 = vector.broadcast %cst_5 : f32 to vector<8x512xf32>
    %7 = arith.maximumf %5, %6 : vector<8x512xf32>
    %c0_6 = arith.constant 0 : index
    %c0_7 = arith.constant 0 : index
    %8 = vector.load %arg4[%c0_6, %c0_7] : memref<512x32xf32, #tpu.memory_space<vmem>>, vector<512x32xf32>
    %cst_8 = arith.constant dense<0.000000e+00> : vector<8x32xf32>
    %9 = tpu.matmul %7, %8, %cst_8 {dimension_numbers = #tpu.dot_dimension_numbers<[1], [0], [0], [1], [0, 0, 1, 1], [], []>} : vector<8x512xf32>, vector<512x32xf32>, vector<8x32xf32> -> vector<8x32xf32>
    %c0_9 = arith.constant 0 : index
    %c0_10 = arith.constant 0 : index
    %10 = vector.load %arg5[%c0_9, %c0_10] : memref<1x32xf32, #tpu.memory_space<vmem>>, vector<1x32xf32>
    %11 = vector.broadcast %10 : vector<1x32xf32> to vector<8x32xf32>
    %12 = arith.addf %9, %11 : vector<8x32xf32>
    %13 = vector.extract_strided_slice %12 {offsets = [0, 0], sizes = [8, 16], strides = [1, 1]} : vector<8x32xf32> to vector<8x16xf32>
    %14 = vector.extract_strided_slice %12 {offsets = [0, 16], sizes = [8, 16], strides = [1, 1]} : vector<8x32xf32> to vector<8x16xf32>
    %cst_11 = arith.constant 5.000000e-01 : f32
    %15 = vector.broadcast %cst_11 : f32 to vector<8x16xf32>
    %16 = arith.mulf %15, %14 : vector<8x16xf32>
    %17 = math.exp %16 : vector<8x16xf32>
    %c0_12 = arith.constant 0 : index
    %c0_13 = arith.constant 0 : index
    %18 = vector.load %arg6[%c0_12, %c0_13] : memref<8x16xf32, #tpu.memory_space<vmem>>, vector<8x16xf32>
    %19 = arith.mulf %18, %17 : vector<8x16xf32>
    %20 = arith.addf %19, %13 : vector<8x16xf32>
    %21 = tpu.concatenate %12, %20 in 1 : vector<8x32xf32>, vector<8x16xf32> -> vector<8x48xf32>
    %c0_14 = arith.constant 0 : index
    %c0_15 = arith.constant 0 : index
    %22 = vector.load %arg7[%c0_14, %c0_15] : memref<8x48xf32, #tpu.memory_space<vmem>>, vector<8x48xf32>
    tpu.vector_store %arg7[%c0_14, %c0_15], %21 {strides = array<i32>} : memref<8x48xf32, #tpu.memory_space<vmem>>, vector<8x48xf32>,
    return
  }
  func.func @transform_0(%arg0: i32) -> (i32, i32) {
    %c0_i32 = arith.constant 0 : i32
    %c0_i32_0 = arith.constant 0 : i32
    return %arg0, %c0_i32 : i32, i32
  }
  func.func @transform_1(%arg0: i32) -> (i32, i32) {
    %c0_i32 = arith.constant 0 : i32
    %c0_i32_0 = arith.constant 0 : i32
    %c0_i32_1 = arith.constant 0 : i32
    return %c0_i32, %c0_i32_0 : i32, i32
  }
  func.func @transform_2(%arg0: i32) -> (i32, i32) {
    %c0_i32 = arith.constant 0 : i32
    %c0_i32_0 = arith.constant 0 : i32
    %c0_i32_1 = arith.constant 0 : i32
    return %c0_i32, %c0_i32_0 : i32, i32
  }
  func.func @transform_3(%arg0: i32) -> (i32, i32) {
    %c0_i32 = arith.constant 0 : i32
    %c0_i32_0 = arith.constant 0 : i32
    %c0_i32_1 = arith.constant 0 : i32
    return %c0_i32, %c0_i32_0 : i32, i32
  }
  func.func @transform_4(%arg0: i32) -> (i32, i32) {
    %c0_i32 = arith.constant 0 : i32
    %c0_i32_0 = arith.constant 0 : i32
    %c0_i32_1 = arith.constant 0 : i32
    return %c0_i32, %c0_i32_0 : i32, i32
  }
  func.func @transform_5(%arg0: i32) -> (i32, i32) {
    %c0_i32 = arith.constant 0 : i32
    %c0_i32_0 = arith.constant 0 : i32
    return %arg0, %c0_i32 : i32, i32
  }
  func.func @transform_6(%arg0: i32) -> (i32, i32) {
    %c0_i32 = arith.constant 0 : i32
    %c0_i32_0 = arith.constant 0 : i32
    return %arg0, %c0_i32 : i32, i32
  }
}

module attributes {stable_mosaic.version = 11 : i64} {
  func.func @prior_kernel(%arg0: i32, %arg1: memref<8x32xf32, #tpu.memory_space<vmem>>, %arg2: memref<32x512xf32, #tpu.memory_space<vmem>>, %arg3: memref<1x512xf32, #tpu.memory_space<vmem>>, %arg4: memref<512x32xf32, #tpu.memory_space<vmem>>, %arg5: memref<1x32xf32, #tpu.memory_space<vmem>>, %arg6: memref<8x16xf32, #tpu.memory_space<vmem>>, %arg7: memref<8x48xf32, #tpu.memory_space<vmem>>) attributes {dimension_semantics = [#tpu.dimension_semantics<parallel>], iteration_bounds = array<i64: 1>, scalar_prefetch = 0 : i64, scratch_operands = 0 : i64, tpu.core_type = #tpu.core_type<tc>, window_params = [{transform_indices = @transform_0, window_bounds = array<i64: 8, 32>}, {pipeline_mode = #tpu.pipeline_mode<synchronous>, transform_indices = @transform_1, window_bounds = array<i64: 32, 512>}, {pipeline_mode = #tpu.pipeline_mode<synchronous>, transform_indices = @transform_2, window_bounds = array<i64: 1, 512>}, {pipeline_mode = #tpu.pipeline_mode<synchronous>, transform_indices = @transform_3, window_bounds = array<i64: 512, 32>}, {pipeline_mode = #tpu.pipeline_mode<synchronous>, transform_indices = @transform_4, window_bounds = array<i64: 1, 32>}, {transform_indices = @transform_5, window_bounds = array<i64: 8, 16>}, {transform_indices = @transform_6, window_bounds = array<i64: 8, 48>}]} {
    %c0 = arith.constant 0 : index
    %c0_0 = arith.constant 0 : index
    %0 = vector.load %arg1[%c0, %c0_0] : memref<8x32xf32, #tpu.memory_space<vmem>>, vector<8x32xf32>
    %c0_1 = arith.constant 0 : index
    %c0_2 = arith.constant 0 : index
    %1 = vector.load %arg2[%c0_1, %c0_2] : memref<32x512xf32, #tpu.memory_space<vmem>>, vector<32x512xf32>
    %cst = arith.constant dense<0.000000e+00> : vector<8x512xf32>
    %2 = tpu.matmul %0, %1, %cst {dimension_numbers = #tpu.dot_dimension_numbers<[1], [0], [0], [1], [0, 0, 1, 1], [], []>} : vector<8x32xf32>, vector<32x512xf32>, vector<8x512xf32> -> vector<8x512xf32>
    %c0_3 = arith.constant 0 : index
    %c0_4 = arith.constant 0 : index
    %3 = vector.load %arg3[%c0_3, %c0_4] : memref<1x512xf32, #tpu.memory_space<vmem>>, vector<1x512xf32>
    %4 = vector.broadcast %3 : vector<1x512xf32> to vector<8x512xf32>
    %5 = arith.addf %2, %4 : vector<8x512xf32>
    %cst_5 = arith.constant 0.000000e+00 : f32
    %6 = vector.broadcast %cst_5 : f32 to vector<8x512xf32>
    %7 = arith.maximumf %5, %6 : vector<8x512xf32>
    %c0_6 = arith.constant 0 : index
    %c0_7 = arith.constant 0 : index
    %8 = vector.load %arg4[%c0_6, %c0_7] : memref<512x32xf32, #tpu.memory_space<vmem>>, vector<512x32xf32>
    %cst_8 = arith.constant dense<0.000000e+00> : vector<8x32xf32>
    %9 = tpu.matmul %7, %8, %cst_8 {dimension_numbers = #tpu.dot_dimension_numbers<[1], [0], [0], [1], [0, 0, 1, 1], [], []>} : vector<8x512xf32>, vector<512x32xf32>, vector<8x32xf32> -> vector<8x32xf32>
    %c0_9 = arith.constant 0 : index
    %c0_10 = arith.constant 0 : index
    %10 = vector.load %arg5[%c0_9, %c0_10] : memref<1x32xf32, #tpu.memory_space<vmem>>, vector<1x32xf32>
    %11 = vector.broadcast %10 : vector<1x32xf32> to vector<8x32xf32>
    %12 = arith.addf %9, %11 : vector<8x32xf32>
    %13 = vector.extract_strided_slice %12 {offsets = [0, 0], sizes = [8, 16], strides = [1, 1]} : vector<8x32xf32> to vector<8x16xf32>
    %14 = vector.extract_strided_slice %12 {offsets = [0, 16], sizes = [8, 16], strides = [1, 1]} : vector<8x32xf32> to vector<8x16xf32>
    %cst_11 = arith.constant 5.000000e-01 : f32
    %15 = vector.broadcast %cst_11 : f32 to vector<8x16xf32>
    %16 = arith.mulf %15, %14 : vector<8x16xf32>
    %17 = math.exp %16 : vector<8x16xf32>
    %c0_12 = arith.constant 0 : index
    %c0_13 = arith.constant 0 : index
    %18 = vector.load %arg6[%c0_12, %c0_13] : memref<8x16xf32, #tpu.memory_space<vmem>>, vector<8x16xf32>
    %19 = arith.mulf %18, %17 : vector<8x16xf32>
    %20 = arith.addf %19, %13 : vector<8x16xf32>
    %21 = tpu.concatenate %12, %20 in 1 : vector<8x32xf32>, vector<8x16xf32> -> vector<8x48xf32>
    %c0_14 = arith.constant 0 : index
    %c0_15 = arith.constant 0 : index
    %22 = vector.load %arg7[%c0_14, %c0_15] : memref<8x48xf32, #tpu.memory_space<vmem>>, vector<8x48xf32>
    tpu.vector_store %arg7[%c0_14, %c0_15], %21 {strides = array<i32>} : memref<8x48xf32, #tpu.memory_space<vmem>>, vector<8x48xf32>,
    return
  }
  func.func @transform_0(%arg0: i32) -> (i32, i32) {
    %c0_i32 = arith.constant 0 : i32
    %c0_i32_0 = arith.constant 0 : i32
    return %arg0, %c0_i32 : i32, i32
  }
  func.func @transform_1(%arg0: i32) -> (i32, i32) {
    %c0_i32 = arith.constant 0 : i32
    %c0_i32_0 = arith.constant 0 : i32
    %c0_i32_1 = arith.constant 0 : i32
    return %c0_i32, %c0_i32_0 : i32, i32
  }
  func.func @transform_2(%arg0: i32) -> (i32, i32) {
    %c0_i32 = arith.constant 0 : i32
    %c0_i32_0 = arith.constant 0 : i32
    %c0_i32_1 = arith.constant 0 : i32
    return %c0_i32, %c0_i32_0 : i32, i32
  }
  func.func @transform_3(%arg0: i32) -> (i32, i32) {
    %c0_i32 = arith.constant 0 : i32
    %c0_i32_0 = arith.constant 0 : i32
    %c0_i32_1 = arith.constant 0 : i32
    return %c0_i32, %c0_i32_0 : i32, i32
  }
  func.func @transform_4(%arg0: i32) -> (i32, i32) {
    %c0_i32 = arith.constant 0 : i32
    %c0_i32_0 = arith.constant 0 : i32
    %c0_i32_1 = arith.constant 0 : i32
    return %c0_i32, %c0_i32_0 : i32, i32
  }
  func.func @transform_5(%arg0: i32) -> (i32, i32) {
    %c0_i32 = arith.constant 0 : i32
    %c0_i32_0 = arith.constant 0 : i32
    return %arg0, %c0_i32 : i32, i32
  }
  func.func @transform_6(%arg0: i32) -> (i32, i32) {
    %c0_i32 = arith.constant 0 : i32
    %c0_i32_0 = arith.constant 0 : i32
    return %arg0, %c0_i32 : i32, i32
  }
}

</mosaic_0001>

<llo_original>
// kernel: tpu_custom_call.1
$region0: #{tpu_custom_call.1}
  #allocation0 [shape = 'u32[]', space=smem, size = 0x4, offset = 0x4, fixed_abs, tag = 'smem constant byte address 0x4 - core index']
  #allocation1 [shape = 'u32[144,128]{1,0:T(1,128)}', space=vmem, size = 0x12000, scoped, tag = 'internal scratch']
  %s0 = inlined_call_operand.vmem [shape: f32[8,32], index: 0, kind: input, shape index: {}]
  %s1 = inlined_call_operand.vmem [shape: f32[32,512], index: 1, kind: input, shape index: {}]
  %s2 = inlined_call_operand.vmem [shape: f32[1,512], index: 2, kind: input, shape index: {}]
  %s3 = inlined_call_operand.vmem [shape: f32[512,32], index: 3, kind: input, shape index: {}]
  %s4 = inlined_call_operand.vmem [shape: f32[1,32], index: 4, kind: input, shape index: {}]
  %s5 = inlined_call_operand.vmem [shape: f32[8,16], index: 5, kind: input, shape index: {}]
  %s6 = inlined_call_operand.hbm [shape: f32[8,48], index: 6, kind: output, shape index: {}]
  %s7 = sld [smem:[#allocation0]]
  $region34: #{tpu_custom_call.1} parent=0
    _
  %s9 = ssub.s32 1, %s7
  %s10 = scalar_select 0, %s9, %s7
  $region1: #{tpu_custom_call.1} parent=0
    #allocation2 [shape = 'u8[4096]{0}', space=vmem, size = 0x1000, scoped, tag = 'output window, operand 0, single buffered']
    #allocation3 [shape = 's32[1]{0}', space=sflag, size = 0x4, scoped, tag = 'scoped memory for tpu_custom_call.1']
    %11 = vsyncpa [#allocation3], 0
    // Predicated region
    $region2: #{tpu_custom_call.1} parent=1 // pred_check
      _
    $region3: #{tpu_custom_call.1} parent=1 // pred_check_branch
      %13 = sbr.rel (0) target = $region5
    $region4: #{tpu_custom_call.1} parent=1 // pred_region
      _
    $region5: #{tpu_custom_call.1} parent=1 // pred_fallthru
      _
    // Predicated region
    $region6: #{tpu_custom_call.1} parent=1 // pred_check
      _
    $region7: #{tpu_custom_call.1} parent=1 // pred_check_branch
      %15 = sbr.rel (0) target = $region9
    $region8: #{tpu_custom_call.1} parent=1 // pred_region
      _
    $region9: #{tpu_custom_call.1} parent=1 // pred_fallthru
      _
    // Predicated region
    $region10: #{tpu_custom_call.1} parent=1 // pred_check
      _
    $region11: #{tpu_custom_call.1} parent=1 // pred_check_branch
      %17 = sbr.rel (0) target = $region13
    $region12: #{tpu_custom_call.1} parent=1 // pred_region
      _
    $region13: #{tpu_custom_call.1} parent=1 // pred_fallthru
      _
    // Predicated region
    $region14: #{tpu_custom_call.1} parent=1 // pred_check
      _
    $region15: #{tpu_custom_call.1} parent=1 // pred_check_branch
      %19 = sbr.rel (0) target = $region17
    $region16: #{tpu_custom_call.1} parent=1 // pred_region
      _
    $region17: #{tpu_custom_call.1} parent=1 // pred_fallthru
      _
    // Predicated region
    $region18: #{tpu_custom_call.1} parent=1 // pred_check
      _
    $region19: #{tpu_custom_call.1} parent=1 // pred_check_branch
      %21 = sbr.rel (0) target = $region21
    $region20: #{tpu_custom_call.1} parent=1 // pred_region
      _
    $region21: #{tpu_custom_call.1} parent=1 // pred_fallthru
      _
    // Predicated region
    $region22: #{tpu_custom_call.1} parent=1 // pred_check
      _
    $region23: #{tpu_custom_call.1} parent=1 // pred_check_branch
      %23 = sbr.rel (0) target = $region25
    $region24: #{tpu_custom_call.1} parent=1 // pred_region
      _
    $region25: #{tpu_custom_call.1} parent=1 // pred_fallthru
      _
    %v24 = vld [vmem:[%s0] sm:$0xff]
    %v25 = vld [vmem:[%s1] sm:$0xff]
    %v26 = vld [vmem:[%s1 + $0x8] sm:$0xff]
    %v27 = vld [vmem:[%s1 + $0x10] sm:$0xff]
    %v28 = vld [vmem:[%s1 + $0x18] sm:$0xff]
    %v29 = vld [vmem:[%s1 + $0x20] sm:$0xff]
    %v30 = vld [vmem:[%s1 + $0x28] sm:$0xff]
    %v31 = vld [vmem:[%s1 + $0x30] sm:$0xff]
    %v32 = vld [vmem:[%s1 + $0x38] sm:$0xff]
    %v33 = vld [vmem:[%s1 + $0x40] sm:$0xff]
    %v34 = vld [vmem:[%s1 + $0x48] sm:$0xff]
    %v35 = vld [vmem:[%s1 + $0x50] sm:$0xff]
    %v36 = vld [vmem:[%s1 + $0x58] sm:$0xff]
    %v37 = vld [vmem:[%s1 + $0x60] sm:$0xff]
    %v38 = vld [vmem:[%s1 + $0x68] sm:$0xff]
    %v39 = vld [vmem:[%s1 + $0x70] sm:$0xff]
    %v40 = vld [vmem:[%s1 + $0x78] sm:$0xff]
    %v41 = vld [vmem:[%s2] sm:$0xf]
    %v43 = vlaneseq
    %v44 = vshrl.u32 %v43, 7
    %v45 = vsub.s32 0, %v44
    %v46 = vrot.slane %v41, %v45
    %v47 = vlaneseq
    %v48 = vshrl.u32 %v47, 7
    %v49 = vsub.s32 1, %v48
    %v50 = vrot.slane %v41, %v49
    %v51 = vlaneseq
    %v52 = vshrl.u32 %v51, 7
    %v53 = vsub.s32 2, %v52
    %v54 = vrot.slane %v41, %v53
    %v55 = vlaneseq
    %v56 = vshrl.u32 %v55, 7
    %v57 = vsub.s32 3, %v56
    %v58 = vrot.slane %v41, %v57
    %vm63 = vcmask 261120
    %v65 = vsel %vm63, %v24, 0
    %67 = vmatprep.subr.mxu0 0.0
    %68 = vmatpush1.msra.mxu0 0.0
    %69 = vmatprep.subr.mxu0 0.0
    %70 = vmatpush1.msra.mxu0 0.0
    %71 = vmatprep.subr.mxu0 0.0
    %72 = vmatpush1.msra.mxu0 0.0
    %73 = vmatprep.subr.mxu0 0.0
    %74 = vmatpush1.msra.mxu0 0.0
    %75 = vmatprep.subr.mxu0 0.0
    %76 = vmatpush1.msra.mxu0 0.0
    %77 = vmatprep.subr.mxu0 0.0
    %78 = vmatpush1.msra.mxu0 0.0
    %79 = vmatprep.subr.mxu0 0.0
    %80 = vmatpush1.msra.mxu0 0.0
    %81 = vmatprep.subr.mxu0 0.0
    %82 = vmatpush1.msra.mxu0 0.0
    %83 = vmatprep.subr.mxu0 0.0
    %84 = vmatpush1.msra.mxu0 0.0
    %85 = vmatprep.subr.mxu0 0.0
    %86 = vmatpush1.msra.mxu0 0.0
    %87 = vmatprep.subr.mxu0 0.0
    %88 = vmatpush1.msra.mxu0 0.0
    %89 = vmatprep.subr.mxu0 0.0
    %90 = vmatpush1.msra.mxu0 0.0
    %91 = vmatprep.subr.mxu0 %v38
    %92 = vmatpush1.msra.mxu0 %v37
    %93 = vmatprep.subr.mxu0 %v34
    %94 = vmatpush1.msra.mxu0 %v33
    %95 = vmatprep.subr.mxu0 %v30
    %96 = vmatpush1.msra.mxu0 %v29
    %97 = vmatprep.subr.mxu0 %v26
    %98 = vmatpush1.msra.mxu0 %v25
    %99 = vmatprep.subr.mxu0 0.0
    %100 = vmatpush2.msra.mxu0 0.0
    %101 = vmatprep.subr.mxu0 0.0
    %102 = vmatpush2.msra.mxu0 0.0
    %103 = vmatprep.subr.mxu0 0.0
    %104 = vmatpush2.msra.mxu0 0.0
    %105 = vmatprep.subr.mxu0 0.0
    %106 = vmatpush2.msra.mxu0 0.0
    %107 = vmatprep.subr.mxu0 0.0
    %108 = vmatpush2.msra.mxu0 0.0
    %109 = vmatprep.subr.mxu0 0.0
    %110 = vmatpush2.msra.mxu0 0.0
    %111 = vmatprep.subr.mxu0 0.0
    %112 = vmatpush2.msra.mxu0 0.0
    %113 = vmatprep.subr.mxu0 0.0
    %114 = vmatpush2.msra.mxu0 0.0
    %115 = vmatprep.subr.mxu0 0.0
    %116 = vmatpush2.msra.mxu0 0.0
    %117 = vmatprep.subr.mxu0 0.0
    %118 = vmatpush2.msra.mxu0 0.0
    %119 = vmatprep.subr.mxu0 0.0
    %120 = vmatpush2.msra.mxu0 0.0
    %121 = vmatprep.subr.mxu0 0.0
    %122 = vmatpush2.msra.mxu0 0.0
    %123 = vmatprep.subr.mxu0 0.0
    %124 = vmatpush2.msra.mxu0 0.0
    %125 = vmatprep.subr.mxu0 0.0
    %126 = vmatpush2.msra.mxu0 0.0
    %127 = vmatprep.subr.mxu0 0.0
    %128 = vmatpush2.msra.mxu0 0.0
    %129 = vmatprep.subr.mxu0 0.0
    %130 = vmatpush2.msra.mxu0 0.0
    %131 = vmatprep.mubr.f32.mxu0 0.0
    %132 = vmatmul.mubr.f32.gmra.mxu0 %v65
    %v133 = vpop.f32.mrf.mxu0
    %v134 = vadd.f32 %v46, %v133
    %v135 = vpop.f32.mrf.mxu0
    %v136 = vadd.f32 %v50, %v135
    %137 = vdwg.mxu0
    %138 = vmatprep.subr.mxu0 0.0
    %139 = vmatpush1.msra.mxu0 0.0
    %140 = vmatprep.subr.mxu0 0.0
    %141 = vmatpush1.msra.mxu0 0.0
    %142 = vmatprep.subr.mxu0 0.0
    %143 = vmatpush1.msra.mxu0 0.0
    %144 = vmatprep.subr.mxu0 0.0
    %145 = vmatpush1.msra.mxu0 0.0
    %146 = vmatprep.subr.mxu0 0.0
    %147 = vmatpush1.msra.mxu0 0.0
    %148 = vmatprep.subr.mxu0 0.0
    %149 = vmatpush1.msra.mxu0 0.0
    %150 = vmatprep.subr.mxu0 0.0
    %151 = vmatpush1.msra.mxu0 0.0
    %152 = vmatprep.subr.mxu0 0.0
    %153 = vmatpush1.msra.mxu0 0.0
    %154 = vmatprep.subr.mxu0 0.0
    %155 = vmatpush1.msra.mxu0 0.0
    %156 = vmatprep.subr.mxu0 0.0
    %157 = vmatpush1.msra.mxu0 0.0
    %158 = vmatprep.subr.mxu0 0.0
    %159 = vmatpush1.msra.mxu0 0.0
    %160 = vmatprep.subr.mxu0 0.0
    %161 = vmatpush1.msra.mxu0 0.0
    %162 = vmatprep.subr.mxu0 %v40
    %163 = vmatpush1.msra.mxu0 %v39
    %164 = vmatprep.subr.mxu0 %v36
    %165 = vmatpush1.msra.mxu0 %v35
    %166 = vmatprep.subr.mxu0 %v32
    %167 = vmatpush1.msra.mxu0 %v31
    %168 = vmatprep.subr.mxu0 %v28
    %169 = vmatpush1.msra.mxu0 %v27
    %170 = vmatprep.subr.mxu0 0.0
    %171 = vmatpush2.msra.mxu0 0.0
    %172 = vmatprep.subr.mxu0 0.0
    %173 = vmatpush2.msra.mxu0 0.0
    %174 = vmatprep.subr.mxu0 0.0
    %175 = vmatpush2.msra.mxu0 0.0
    %176 = vmatprep.subr.mxu0 0.0
    %177 = vmatpush2.msra.mxu0 0.0
    %178 = vmatprep.subr.mxu0 0.0
    %179 = vmatpush2.msra.mxu0 0.0
    %180 = vmatprep.subr.mxu0 0.0
    %181 = vmatpush2.msra.mxu0 0.0
    %182 = vmatprep.subr.mxu0 0.0
    %183 = vmatpush2.msra.mxu0 0.0
    %184 = vmatprep.subr.mxu0 0.0
    %185 = vmatpush2.msra.mxu0 0.0
    %186 = vmatprep.subr.mxu0 0.0
    %187 = vmatpush2.msra.mxu0 0.0
    %188 = vmatprep.subr.mxu0 0.0
    %189 = vmatpush2.msra.mxu0 0.0
    %190 = vmatprep.subr.mxu0 0.0
    %191 = vmatpush2.msra.mxu0 0.0
    %192 = vmatprep.subr.mxu0 0.0
    %193 = vmatpush2.msra.mxu0 0.0
    %194 = vmatprep.subr.mxu0 0.0
    %195 = vmatpush2.msra.mxu0 0.0
    %196 = vmatprep.subr.mxu0 0.0
    %197 = vmatpush2.msra.mxu0 0.0
    %198 = vmatprep.subr.mxu0 0.0
    %199 = vmatpush2.msra.mxu0 0.0
    %200 = vmatprep.subr.mxu0 0.0
    %201 = vmatpush2.msra.mxu0 0.0
    %202 = vmatprep.mubr.f32.mxu0 0.0
    %203 = vmatmul.mubr.f32.gmra.mxu0 %v65
    %v204 = vpop.f32.mrf.mxu0
    %v205 = vadd.f32 %v54, %v204
    %v206 = vpop.f32.mrf.mxu0
    %v207 = vadd.f32 %v58, %v206
    %208 = vdwg.mxu0
    %v209 = vmax.f32 %v134, 0.0
    %v210 = vmax.f32 %v136, 0.0
    %v211 = vmax.f32 %v205, 0.0
    %v212 = vmax.f32 %v207, 0.0
    %v213 = vld [vmem:[%s3] sm:$0xff]
    %v214 = vld [vmem:[%s3 + $0x8] sm:$0xff]
    %v215 = vld [vmem:[%s3 + $0x10] sm:$0xff]
    %v216 = vld [vmem:[%s3 + $0x18] sm:$0xff]
    %v217 = vld [vmem:[%s3 + $0x20] sm:$0xff]
    %v218 = vld [vmem:[%s3 + $0x28] sm:$0xff]
    %v219 = vld [vmem:[%s3 + $0x30] sm:$0xff]
    %v220 = vld [vmem:[%s3 + $0x38] sm:$0xff]
    %v221 = vld [vmem:[%s3 + $0x40] sm:$0xff]
    %v222 = vld [vmem:[%s3 + $0x48] sm:$0xff]
    %v223 = vld [vmem:[%s3 + $0x50] sm:$0xff]
    %v224 = vld [vmem:[%s3 + $0x58] sm:$0xff]
    %v225 = vld [vmem:[%s3 + $0x60] sm:$0xff]
    %v226 = vld [vmem:[%s3 + $0x68] sm:$0xff]
    %v227 = vld [vmem:[%s3 + $0x70] sm:$0xff]
    %v228 = vld [vmem:[%s3 + $0x78] sm:$0xff]
    %v229 = vld [vmem:[%s3 + $0x80] sm:$0xff]
    %v230 = vld [vmem:[%s3 + $0x88] sm:$0xff]
    %v231 = vld [vmem:[%s3 + $0x90] sm:$0xff]
    %v232 = vld [vmem:[%s3 + $0x98] sm:$0xff]
    %v233 = vld [vmem:[%s3 + $0xa0] sm:$0xff]
    %v234 = vld [vmem:[%s3 + $0xa8] sm:$0xff]
    %v235 = vld [vmem:[%s3 + $0xb0] sm:$0xff]
    %v236 = vld [vmem:[%s3 + $0xb8] sm:$0xff]
    %v237 = vld [vmem:[%s3 + $0xc0] sm:$0xff]
    %v238 = vld [vmem:[%s3 + $0xc8] sm:$0xff]
    %v239 = vld [vmem:[%s3 + $0xd0] sm:$0xff]
    %v240 = vld [vmem:[%s3 + $0xd8] sm:$0xff]
    %v241 = vld [vmem:[%s3 + $0xe0] sm:$0xff]
    %v242 = vld [vmem:[%s3 + $0xe8] sm:$0xff]
    %v243 = vld [vmem:[%s3 + $0xf0] sm:$0xff]
    %v244 = vld [vmem:[%s3 + $0xf8] sm:$0xff]
    %v245 = vld [vmem:[%s3 + $0x100] sm:$0xff]
    %v246 = vld [vmem:[%s3 + $0x108] sm:$0xff]
    %v247 = vld [vmem:[%s3 + $0x110] sm:$0xff]
    %v248 = vld [vmem:[%s3 + $0x118] sm:$0xff]
    %v249 = vld [vmem:[%s3 + $0x120] sm:$0xff]
    %v250 = vld [vmem:[%s3 + $0x128] sm:$0xff]
    %v251 = vld [vmem:[%s3 + $0x130] sm:$0xff]
    %v252 = vld [vmem:[%s3 + $0x138] sm:$0xff]
    %v253 = vld [vmem:[%s3 + $0x140] sm:$0xff]
    %v254 = vld [vmem:[%s3 + $0x148] sm:$0xff]
    %v255 = vld [vmem:[%s3 + $0x150] sm:$0xff]
    %v256 = vld [vmem:[%s3 + $0x158] sm:$0xff]
    %v257 = vld [vmem:[%s3 + $0x160] sm:$0xff]
    %v258 = vld [vmem:[%s3 + $0x168] sm:$0xff]
    %v259 = vld [vmem:[%s3 + $0x170] sm:$0xff]
    %v260 = vld [vmem:[%s3 + $0x178] sm:$0xff]
    %v261 = vld [vmem:[%s3 + $0x180] sm:$0xff]
    %v262 = vld [vmem:[%s3 + $0x188] sm:$0xff]
    %v263 = vld [vmem:[%s3 + $0x190] sm:$0xff]
    %v264 = vld [vmem:[%s3 + $0x198] sm:$0xff]
    %v265 = vld [vmem:[%s3 + $0x1a0] sm:$0xff]
    %v266 = vld [vmem:[%s3 + $0x1a8] sm:$0xff]
    %v267 = vld [vmem:[%s3 + $0x1b0] sm:$0xff]
    %v268 = vld [vmem:[%s3 + $0x1b8] sm:$0xff]
    %v269 = vld [vmem:[%s3 + $0x1c0] sm:$0xff]
    %v270 = vld [vmem:[%s3 + $0x1c8] sm:$0xff]
    %v271 = vld [vmem:[%s3 + $0x1d0] sm:$0xff]
    %v272 = vld [vmem:[%s3 + $0x1d8] sm:$0xff]
    %v273 = vld [vmem:[%s3 + $0x1e0] sm:$0xff]
    %v274 = vld [vmem:[%s3 + $0x1e8] sm:$0xff]
    %v275 = vld [vmem:[%s3 + $0x1f0] sm:$0xff]
    %v276 = vld [vmem:[%s3 + $0x1f8] sm:$0xff]
    %v277 = vld [vmem:[%s4] sm:$0x1]
    %v279 = vlaneseq
    %v280 = vshrl.u32 %v279, 7
    %v281 = vsub.s32 0, %v280
    %v282 = vrot.slane %v277, %v281
    %284 = vmatprep.subr.mxu0 0.0
    %285 = vmatpush1.msra.mxu0 %v228
    %286 = vmatprep.subr.mxu0 0.0
    %287 = vmatpush1.msra.mxu0 %v227
    %288 = vmatprep.subr.mxu0 0.0
    %289 = vmatpush1.msra.mxu0 %v226
    %290 = vmatprep.subr.mxu0 0.0
    %291 = vmatpush1.msra.mxu0 %v225
    %292 = vmatprep.subr.mxu0 0.0
    %293 = vmatpush1.msra.mxu0 %v224
    %294 = vmatprep.subr.mxu0 0.0
    %295 = vmatpush1.msra.mxu0 %v223
    %296 = vmatprep.subr.mxu0 0.0
    %297 = vmatpush1.msra.mxu0 %v222
    %298 = vmatprep.subr.mxu0 0.0
    %299 = vmatpush1.msra.mxu0 %v221
    %300 = vmatprep.subr.mxu0 0.0
    %301 = vmatpush1.msra.mxu0 %v220
    %302 = vmatprep.subr.mxu0 0.0
    %303 = vmatpush1.msra.mxu0 %v219
    %304 = vmatprep.subr.mxu0 0.0
    %305 = vmatpush1.msra.mxu0 %v218
    %306 = vmatprep.subr.mxu0 0.0
    %307 = vmatpush1.msra.mxu0 %v217
    %308 = vmatprep.subr.mxu0 0.0
    %309 = vmatpush1.msra.mxu0 %v216
    %310 = vmatprep.subr.mxu0 0.0
    %311 = vmatpush1.msra.mxu0 %v215
    %312 = vmatprep.subr.mxu0 0.0
    %313 = vmatpush1.msra.mxu0 %v214
    %314 = vmatprep.subr.mxu0 0.0
    %315 = vmatpush1.msra.mxu0 %v213
    %316 = vmatprep.subr.mxu0 0.0
    %317 = vmatpush2.msra.mxu0 %v244
    %318 = vmatprep.subr.mxu0 0.0
    %319 = vmatpush2.msra.mxu0 %v243
    %320 = vmatprep.subr.mxu0 0.0
    %321 = vmatpush2.msra.mxu0 %v242
    %322 = vmatprep.subr.mxu0 0.0
    %323 = vmatpush2.msra.mxu0 %v241
    %324 = vmatprep.subr.mxu0 0.0
    %325 = vmatpush2.msra.mxu0 %v240
    %326 = vmatprep.subr.mxu0 0.0
    %327 = vmatpush2.msra.mxu0 %v239
    %328 = vmatprep.subr.mxu0 0.0
    %329 = vmatpush2.msra.mxu0 %v238
    %330 = vmatprep.subr.mxu0 0.0
    %331 = vmatpush2.msra.mxu0 %v237
    %332 = vmatprep.subr.mxu0 0.0
    %333 = vmatpush2.msra.mxu0 %v236
    %334 = vmatprep.subr.mxu0 0.0
    %335 = vmatpush2.msra.mxu0 %v235
    %336 = vmatprep.subr.mxu0 0.0
    %337 = vmatpush2.msra.mxu0 %v234
    %338 = vmatprep.subr.mxu0 0.0
    %339 = vmatpush2.msra.mxu0 %v233
    %340 = vmatprep.subr.mxu0 0.0
    %341 = vmatpush2.msra.mxu0 %v232
    %342 = vmatprep.subr.mxu0 0.0
    %343 = vmatpush2.msra.mxu0 %v231
    %344 = vmatprep.subr.mxu0 0.0
    %345 = vmatpush2.msra.mxu0 %v230
    %346 = vmatprep.subr.mxu0 0.0
    %347 = vmatpush2.msra.mxu0 %v229
    %348 = vmatprep.mubr.f32.mxu0 %v210
    %349 = vmatmul.mubr.f32.gmra.mxu0 %v209
    %v350 = vpop.f32.mrf.mxu0
    %v351 = vadd.f32 %v282, %v350
    %v352 = vpop.f32.mrf.mxu0
    %353 = vdwg.mxu0
    %354 = vmatprep.subr.mxu0 0.0
    %355 = vmatpush1.msra.mxu0 %v260
    %356 = vmatprep.subr.mxu0 0.0
    %357 = vmatpush1.msra.mxu0 %v259
    %358 = vmatprep.subr.mxu0 0.0
    %359 = vmatpush1.msra.mxu0 %v258
    %360 = vmatprep.subr.mxu0 0.0
    %361 = vmatpush1.msra.mxu0 %v257
    %362 = vmatprep.subr.mxu0 0.0
    %363 = vmatpush1.msra.mxu0 %v256
    %364 = vmatprep.subr.mxu0 0.0
    %365 = vmatpush1.msra.mxu0 %v255
    %366 = vmatprep.subr.mxu0 0.0
    %367 = vmatpush1.msra.mxu0 %v254
    %368 = vmatprep.subr.mxu0 0.0
    %369 = vmatpush1.msra.mxu0 %v253
    %370 = vmatprep.subr.mxu0 0.0
    %371 = vmatpush1.msra.mxu0 %v252
    %372 = vmatprep.subr.mxu0 0.0
    %373 = vmatpush1.msra.mxu0 %v251
    %374 = vmatprep.subr.mxu0 0.0
    %375 = vmatpush1.msra.mxu0 %v250
    %376 = vmatprep.subr.mxu0 0.0
    %377 = vmatpush1.msra.mxu0 %v249
    %378 = vmatprep.subr.mxu0 0.0
    %379 = vmatpush1.msra.mxu0 %v248
    %380 = vmatprep.subr.mxu0 0.0
    %381 = vmatpush1.msra.mxu0 %v247
    %382 = vmatprep.subr.mxu0 0.0
    %383 = vmatpush1.msra.mxu0 %v246
    %384 = vmatprep.subr.mxu0 0.0
    %385 = vmatpush1.msra.mxu0 %v245
    %386 = vmatprep.subr.mxu0 0.0
    %387 = vmatpush2.msra.mxu0 %v276
    %388 = vmatprep.subr.mxu0 0.0
    %389 = vmatpush2.msra.mxu0 %v275
    %390 = vmatprep.subr.mxu0 0.0
    %391 = vmatpush2.msra.mxu0 %v274
    %392 = vmatprep.subr.mxu0 0.0
    %393 = vmatpush2.msra.mxu0 %v273
    %394 = vmatprep.subr.mxu0 0.0
    %395 = vmatpush2.msra.mxu0 %v272
    %396 = vmatprep.subr.mxu0 0.0
    %397 = vmatpush2.msra.mxu0 %v271
    %398 = vmatprep.subr.mxu0 0.0
    %399 = vmatpush2.msra.mxu0 %v270
    %400 = vmatprep.subr.mxu0 0.0
    %401 = vmatpush2.msra.mxu0 %v269
    %402 = vmatprep.subr.mxu0 0.0
    %403 = vmatpush2.msra.mxu0 %v268
    %404 = vmatprep.subr.mxu0 0.0
    %405 = vmatpush2.msra.mxu0 %v267
    %406 = vmatprep.subr.mxu0 0.0
    %407 = vmatpush2.msra.mxu0 %v266
    %408 = vmatprep.subr.mxu0 0.0
    %409 = vmatpush2.msra.mxu0 %v265
    %410 = vmatprep.subr.mxu0 0.0
    %411 = vmatpush2.msra.mxu0 %v264
    %412 = vmatprep.subr.mxu0 0.0
    %413 = vmatpush2.msra.mxu0 %v263
    %414 = vmatprep.subr.mxu0 0.0
    %415 = vmatpush2.msra.mxu0 %v262
    %416 = vmatprep.subr.mxu0 0.0
    %417 = vmatpush2.msra.mxu0 %v261
    %418 = vmatprep.mubr.f32.mxu0 %v212
    %419 = vmatmul.mubr.f32.gmra.mxu0 %v211
    %v420 = vpop.f32.mrf.mxu0
    %v421 = vadd.f32 %v351, %v420
    %v422 = vpop.f32.mrf.mxu0
    %423 = vdwg.mxu0
    %v424 = vmul.f32 %v421, 0.5
    %v425 = vmul.f32 %v424, 1.442695
    %v426 = vpow.pop %v425
    %v427 = vld [vmem:[%s5] sm:$0xff]
    %429 = vrot.lane.b32.xlu0 %v426, 112
    %v430 = vpop.permute.xlu0 %429
    %v432 = vmul.f32 %v427, %v430
    %v433 = vadd.f32 %v432, %v421
    %435 = vrot.lane.b32.xlu0 %v433, 32
    %v436 = vpop.permute.xlu0 %435
    %v438 = vsel %vm63, %v421, %v436
    %vm439 = vcmask 392192
    %440 = vst.msk [vmem:[#allocation2] sm:$0xff] %vm439, %v438
    // Predicated region
    $region26: #{tpu_custom_call.1} parent=1 // pred_check
      _
    $region27: #{tpu_custom_call.1} parent=1 // pred_check_branch
      %442 = sbr.rel (0) target = $region29
    $region28: #{tpu_custom_call.1} parent=1 // pred_region
      %s444 = ssub.s32 128, 128
      %445 = vsyncadd [#allocation3], %s444
      %s447 = sshll.u32 [#allocation2], 4
      %s448 = int_to_ptr.vmem [resolvable:$true] %s447
      %450 = dma.vmem_to_hbm [thread:$0]  %s448, 128, %s6, [#allocation3]
    $region29: #{tpu_custom_call.1} parent=1 // pred_fallthru
      _
    // Predicated region
    $region30: #{tpu_custom_call.1} parent=1 // pred_check
      _
    $region31: #{tpu_custom_call.1} parent=1 // pred_check_branch
      %452 = sbr.rel (0) target = $region33
    $region32: #{tpu_custom_call.1} parent=1 // pred_region
      %453 = dma.done [#allocation3], 128
    $region33: #{tpu_custom_call.1} parent=1 // pred_fallthru
      _
    %454 = vsyncpa [#allocation3], 1

// kernel: tpu_custom_call.1
$region0: #{tpu_custom_call.1}
  #allocation0 [shape = 'u32[]', space=smem, size = 0x4, offset = 0x4, fixed_abs, tag = 'smem constant byte address 0x4 - core index']
  #allocation1 [shape = 'u32[144,128]{1,0:T(1,128)}', space=vmem, size = 0x12000, scoped, tag = 'internal scratch']
  %s0 = inlined_call_operand.vmem [shape: f32[8,32], index: 0, kind: input, shape index: {}]
  %s1 = inlined_call_operand.vmem [shape: f32[32,512], index: 1, kind: input, shape index: {}]
  %s2 = inlined_call_operand.vmem [shape: f32[1,512], index: 2, kind: input, shape index: {}]
  %s3 = inlined_call_operand.vmem [shape: f32[512,32], index: 3, kind: input, shape index: {}]
  %s4 = inlined_call_operand.vmem [shape: f32[1,32], index: 4, kind: input, shape index: {}]
  %s5 = inlined_call_operand.vmem [shape: f32[8,16], index: 5, kind: input, shape index: {}]
  %s6 = inlined_call_operand.hbm [shape: f32[8,48], index: 6, kind: output, shape index: {}]
  %s7 = sld [smem:[#allocation0]]
  $region34: #{tpu_custom_call.1} parent=0
    _
  %s9 = ssub.s32 1, %s7
  %s10 = scalar_select 0, %s9, %s7
  $region1: #{tpu_custom_call.1} parent=0
    #allocation2 [shape = 'u8[4096]{0}', space=vmem, size = 0x1000, scoped, tag = 'output window, operand 0, single buffered']
    #allocation3 [shape = 's32[1]{0}', space=sflag, size = 0x4, scoped, tag = 'scoped memory for tpu_custom_call.1']
    %11 = vsyncpa [#allocation3], 0
    // Predicated region
    $region2: #{tpu_custom_call.1} parent=1 // pred_check
      _
    $region3: #{tpu_custom_call.1} parent=1 // pred_check_branch
      %13 = sbr.rel (0) target = $region5
    $region4: #{tpu_custom_call.1} parent=1 // pred_region
      _
    $region5: #{tpu_custom_call.1} parent=1 // pred_fallthru
      _
    // Predicated region
    $region6: #{tpu_custom_call.1} parent=1 // pred_check
      _
    $region7: #{tpu_custom_call.1} parent=1 // pred_check_branch
      %15 = sbr.rel (0) target = $region9
    $region8: #{tpu_custom_call.1} parent=1 // pred_region
      _
    $region9: #{tpu_custom_call.1} parent=1 // pred_fallthru
      _
    // Predicated region
    $region10: #{tpu_custom_call.1} parent=1 // pred_check
      _
    $region11: #{tpu_custom_call.1} parent=1 // pred_check_branch
      %17 = sbr.rel (0) target = $region13
    $region12: #{tpu_custom_call.1} parent=1 // pred_region
      _
    $region13: #{tpu_custom_call.1} parent=1 // pred_fallthru
      _
    // Predicated region
    $region14: #{tpu_custom_call.1} parent=1 // pred_check
      _
    $region15: #{tpu_custom_call.1} parent=1 // pred_check_branch
      %19 = sbr.rel (0) target = $region17
    $region16: #{tpu_custom_call.1} parent=1 // pred_region
      _
    $region17: #{tpu_custom_call.1} parent=1 // pred_fallthru
      _
    // Predicated region
    $region18: #{tpu_custom_call.1} parent=1 // pred_check
      _
    $region19: #{tpu_custom_call.1} parent=1 // pred_check_branch
      %21 = sbr.rel (0) target = $region21
    $region20: #{tpu_custom_call.1} parent=1 // pred_region
      _
    $region21: #{tpu_custom_call.1} parent=1 // pred_fallthru
      _
    // Predicated region
    $region22: #{tpu_custom_call.1} parent=1 // pred_check
      _
    $region23: #{tpu_custom_call.1} parent=1 // pred_check_branch
      %23 = sbr.rel (0) target = $region25
    $region24: #{tpu_custom_call.1} parent=1 // pred_region
      _
    $region25: #{tpu_custom_call.1} parent=1 // pred_fallthru
      _
    %v24 = vld [vmem:[%s0] sm:$0xff]
    %v25 = vld [vmem:[%s1] sm:$0xff]
    %v26 = vld [vmem:[%s1 + $0x8] sm:$0xff]
    %v27 = vld [vmem:[%s1 + $0x10] sm:$0xff]
    %v28 = vld [vmem:[%s1 + $0x18] sm:$0xff]
    %v29 = vld [vmem:[%s1 + $0x20] sm:$0xff]
    %v30 = vld [vmem:[%s1 + $0x28] sm:$0xff]
    %v31 = vld [vmem:[%s1 + $0x30] sm:$0xff]
    %v32 = vld [vmem:[%s1 + $0x38] sm:$0xff]
    %v33 = vld [vmem:[%s1 + $0x40] sm:$0xff]
    %v34 = vld [vmem:[%s1 + $0x48] sm:$0xff]
    %v35 = vld [vmem:[%s1 + $0x50] sm:$0xff]
    %v36 = vld [vmem:[%s1 + $0x58] sm:$0xff]
    %v37 = vld [vmem:[%s1 + $0x60] sm:$0xff]
    %v38 = vld [vmem:[%s1 + $0x68] sm:$0xff]
    %v39 = vld [vmem:[%s1 + $0x70] sm:$0xff]
    %v40 = vld [vmem:[%s1 + $0x78] sm:$0xff]
    %v41 = vld [vmem:[%s2] sm:$0xf]
    %v43 = vlaneseq
    %v44 = vshrl.u32 %v43, 7
    %v45 = vsub.s32 0, %v44
    %v46 = vrot.slane %v41, %v45
    %v47 = vlaneseq
    %v48 = vshrl.u32 %v47, 7
    %v49 = vsub.s32 1, %v48
    %v50 = vrot.slane %v41, %v49
    %v51 = vlaneseq
    %v52 = vshrl.u32 %v51, 7
    %v53 = vsub.s32 2, %v52
    %v54 = vrot.slane %v41, %v53
    %v55 = vlaneseq
    %v56 = vshrl.u32 %v55, 7
    %v57 = vsub.s32 3, %v56
    %v58 = vrot.slane %v41, %v57
    %vm63 = vcmask 261120
    %v65 = vsel %vm63, %v24, 0
    %67 = vmatprep.subr.mxu0 0.0
    %68 = vmatpush1.msra.mxu0 0.0
    %69 = vmatprep.subr.mxu0 0.0
    %70 = vmatpush1.msra.mxu0 0.0
    %71 = vmatprep.subr.mxu0 0.0
    %72 = vmatpush1.msra.mxu0 0.0
    %73 = vmatprep.subr.mxu0 0.0
    %74 = vmatpush1.msra.mxu0 0.0
    %75 = vmatprep.subr.mxu0 0.0
    %76 = vmatpush1.msra.mxu0 0.0
    %77 = vmatprep.subr.mxu0 0.0
    %78 = vmatpush1.msra.mxu0 0.0
    %79 = vmatprep.subr.mxu0 0.0
    %80 = vmatpush1.msra.mxu0 0.0
    %81 = vmatprep.subr.mxu0 0.0
    %82 = vmatpush1.msra.mxu0 0.0
    %83 = vmatprep.subr.mxu0 0.0
    %84 = vmatpush1.msra.mxu0 0.0
    %85 = vmatprep.subr.mxu0 0.0
    %86 = vmatpush1.msra.mxu0 0.0
    %87 = vmatprep.subr.mxu0 0.0
    %88 = vmatpush1.msra.mxu0 0.0
    %89 = vmatprep.subr.mxu0 0.0
    %90 = vmatpush1.msra.mxu0 0.0
    %91 = vmatprep.subr.mxu0 %v38
    %92 = vmatpush1.msra.mxu0 %v37
    %93 = vmatprep.subr.mxu0 %v34
    %94 = vmatpush1.msra.mxu0 %v33
    %95 = vmatprep.subr.mxu0 %v30
    %96 = vmatpush1.msra.mxu0 %v29
    %97 = vmatprep.subr.mxu0 %v26
    %98 = vmatpush1.msra.mxu0 %v25
    %99 = vmatprep.subr.mxu0 0.0
    %100 = vmatpush2.msra.mxu0 0.0
    %101 = vmatprep.subr.mxu0 0.0
    %102 = vmatpush2.msra.mxu0 0.0
    %103 = vmatprep.subr.mxu0 0.0
    %104 = vmatpush2.msra.mxu0 0.0
    %105 = vmatprep.subr.mxu0 0.0
    %106 = vmatpush2.msra.mxu0 0.0
    %107 = vmatprep.subr.mxu0 0.0
    %108 = vmatpush2.msra.mxu0 0.0
    %109 = vmatprep.subr.mxu0 0.0
    %110 = vmatpush2.msra.mxu0 0.0
    %111 = vmatprep.subr.mxu0 0.0
    %112 = vmatpush2.msra.mxu0 0.0
    %113 = vmatprep.subr.mxu0 0.0
    %114 = vmatpush2.msra.mxu0 0.0
    %115 = vmatprep.subr.mxu0 0.0
    %116 = vmatpush2.msra.mxu0 0.0
    %117 = vmatprep.subr.mxu0 0.0
    %118 = vmatpush2.msra.mxu0 0.0
    %119 = vmatprep.subr.mxu0 0.0
    %120 = vmatpush2.msra.mxu0 0.0
    %121 = vmatprep.subr.mxu0 0.0
    %122 = vmatpush2.msra.mxu0 0.0
    %123 = vmatprep.subr.mxu0 0.0
    %124 = vmatpush2.msra.mxu0 0.0
    %125 = vmatprep.subr.mxu0 0.0
    %126 = vmatpush2.msra.mxu0 0.0
    %127 = vmatprep.subr.mxu0 0.0
    %128 = vmatpush2.msra.mxu0 0.0
    %129 = vmatprep.subr.mxu0 0.0
    %130 = vmatpush2.msra.mxu0 0.0
    %131 = vmatprep.mubr.f32.mxu0 0.0
    %132 = vmatmul.mubr.f32.gmra.mxu0 %v65
    %v133 = vpop.f32.mrf.mxu0
    %v134 = vadd.f32 %v46, %v133
    %v135 = vpop.f32.mrf.mxu0
    %v136 = vadd.f32 %v50, %v135
    %137 = vdwg.mxu0
    %138 = vmatprep.subr.mxu0 0.0
    %139 = vmatpush1.msra.mxu0 0.0
    %140 = vmatprep.subr.mxu0 0.0
    %141 = vmatpush1.msra.mxu0 0.0
    %142 = vmatprep.subr.mxu0 0.0
    %143 = vmatpush1.msra.mxu0 0.0
    %144 = vmatprep.subr.mxu0 0.0
    %145 = vmatpush1.msra.mxu0 0.0
    %146 = vmatprep.subr.mxu0 0.0
    %147 = vmatpush1.msra.mxu0 0.0
    %148 = vmatprep.subr.mxu0 0.0
    %149 = vmatpush1.msra.mxu0 0.0
    %150 = vmatprep.subr.mxu0 0.0
    %151 = vmatpush1.msra.mxu0 0.0
    %152 = vmatprep.subr.mxu0 0.0
    %153 = vmatpush1.msra.mxu0 0.0
    %154 = vmatprep.subr.mxu0 0.0
    %155 = vmatpush1.msra.mxu0 0.0
    %156 = vmatprep.subr.mxu0 0.0
    %157 = vmatpush1.msra.mxu0 0.0
    %158 = vmatprep.subr.mxu0 0.0
    %159 = vmatpush1.msra.mxu0 0.0
    %160 = vmatprep.subr.mxu0 0.0
    %161 = vmatpush1.msra.mxu0 0.0
    %162 = vmatprep.subr.mxu0 %v40
    %163 = vmatpush1.msra.mxu0 %v39
    %164 = vmatprep.subr.mxu0 %v36
    %165 = vmatpush1.msra.mxu0 %v35
    %166 = vmatprep.subr.mxu0 %v32
    %167 = vmatpush1.msra.mxu0 %v31
    %168 = vmatprep.subr.mxu0 %v28
    %169 = vmatpush1.msra.mxu0 %v27
    %170 = vmatprep.subr.mxu0 0.0
    %171 = vmatpush2.msra.mxu0 0.0
    %172 = vmatprep.subr.mxu0 0.0
    %173 = vmatpush2.msra.mxu0 0.0
    %174 = vmatprep.subr.mxu0 0.0
    %175 = vmatpush2.msra.mxu0 0.0
    %176 = vmatprep.subr.mxu0 0.0
    %177 = vmatpush2.msra.mxu0 0.0
    %178 = vmatprep.subr.mxu0 0.0
    %179 = vmatpush2.msra.mxu0 0.0
    %180 = vmatprep.subr.mxu0 0.0
    %181 = vmatpush2.msra.mxu0 0.0
    %182 = vmatprep.subr.mxu0 0.0
    %183 = vmatpush2.msra.mxu0 0.0
    %184 = vmatprep.subr.mxu0 0.0
    %185 = vmatpush2.msra.mxu0 0.0
    %186 = vmatprep.subr.mxu0 0.0
    %187 = vmatpush2.msra.mxu0 0.0
    %188 = vmatprep.subr.mxu0 0.0
    %189 = vmatpush2.msra.mxu0 0.0
    %190 = vmatprep.subr.mxu0 0.0
    %191 = vmatpush2.msra.mxu0 0.0
    %192 = vmatprep.subr.mxu0 0.0
    %193 = vmatpush2.msra.mxu0 0.0
    %194 = vmatprep.subr.mxu0 0.0
    %195 = vmatpush2.msra.mxu0 0.0
    %196 = vmatprep.subr.mxu0 0.0
    %197 = vmatpush2.msra.mxu0 0.0
    %198 = vmatprep.subr.mxu0 0.0
    %199 = vmatpush2.msra.mxu0 0.0
    %200 = vmatprep.subr.mxu0 0.0
    %201 = vmatpush2.msra.mxu0 0.0
    %202 = vmatprep.mubr.f32.mxu0 0.0
    %203 = vmatmul.mubr.f32.gmra.mxu0 %v65
    %v204 = vpop.f32.mrf.mxu0
    %v205 = vadd.f32 %v54, %v204
    %v206 = vpop.f32.mrf.mxu0
    %v207 = vadd.f32 %v58, %v206
    %208 = vdwg.mxu0
    %v209 = vmax.f32 %v134, 0.0
    %v210 = vmax.f32 %v136, 0.0
    %v211 = vmax.f32 %v205, 0.0
    %v212 = vmax.f32 %v207, 0.0
    %v213 = vld [vmem:[%s3] sm:$0xff]
    %v214 = vld [vmem:[%s3 + $0x8] sm:$0xff]
    %v215 = vld [vmem:[%s3 + $0x10] sm:$0xff]
    %v216 = vld [vmem:[%s3 + $0x18] sm:$0xff]
    %v217 = vld [vmem:[%s3 + $0x20] sm:$0xff]
    %v218 = vld [vmem:[%s3 + $0x28] sm:$0xff]
    %v219 = vld [vmem:[%s3 + $0x30] sm:$0xff]
    %v220 = vld [vmem:[%s3 + $0x38] sm:$0xff]
    %v221 = vld [vmem:[%s3 + $0x40] sm:$0xff]
    %v222 = vld [vmem:[%s3 + $0x48] sm:$0xff]
    %v223 = vld [vmem:[%s3 + $0x50] sm:$0xff]
    %v224 = vld [vmem:[%s3 + $0x58] sm:$0xff]
    %v225 = vld [vmem:[%s3 + $0x60] sm:$0xff]
    %v226 = vld [vmem:[%s3 + $0x68] sm:$0xff]
    %v227 = vld [vmem:[%s3 + $0x70] sm:$0xff]
    %v228 = vld [vmem:[%s3 + $0x78] sm:$0xff]
    %v229 = vld [vmem:[%s3 + $0x80] sm:$0xff]
    %v230 = vld [vmem:[%s3 + $0x88] sm:$0xff]
    %v231 = vld [vmem:[%s3 + $0x90] sm:$0xff]
    %v232 = vld [vmem:[%s3 + $0x98] sm:$0xff]
    %v233 = vld [vmem:[%s3 + $0xa0] sm:$0xff]
    %v234 = vld [vmem:[%s3 + $0xa8] sm:$0xff]
    %v235 = vld [vmem:[%s3 + $0xb0] sm:$0xff]
    %v236 = vld [vmem:[%s3 + $0xb8] sm:$0xff]
    %v237 = vld [vmem:[%s3 + $0xc0] sm:$0xff]
    %v238 = vld [vmem:[%s3 + $0xc8] sm:$0xff]
    %v239 = vld [vmem:[%s3 + $0xd0] sm:$0xff]
    %v240 = vld [vmem:[%s3 + $0xd8] sm:$0xff]
    %v241 = vld [vmem:[%s3 + $0xe0] sm:$0xff]
    %v242 = vld [vmem:[%s3 + $0xe8] sm:$0xff]
    %v243 = vld [vmem:[%s3 + $0xf0] sm:$0xff]
    %v244 = vld [vmem:[%s3 + $0xf8] sm:$0xff]
    %v245 = vld [vmem:[%s3 + $0x100] sm:$0xff]
    %v246 = vld [vmem:[%s3 + $0x108] sm:$0xff]
    %v247 = vld [vmem:[%s3 + $0x110] sm:$0xff]
    %v248 = vld [vmem:[%s3 + $0x118] sm:$0xff]
    %v249 = vld [vmem:[%s3 + $0x120] sm:$0xff]
    %v250 = vld [vmem:[%s3 + $0x128] sm:$0xff]
    %v251 = vld [vmem:[%s3 + $0x130] sm:$0xff]
    %v252 = vld [vmem:[%s3 + $0x138] sm:$0xff]
    %v253 = vld [vmem:[%s3 + $0x140] sm:$0xff]
    %v254 = vld [vmem:[%s3 + $0x148] sm:$0xff]
    %v255 = vld [vmem:[%s3 + $0x150] sm:$0xff]
    %v256 = vld [vmem:[%s3 + $0x158] sm:$0xff]
    %v257 = vld [vmem:[%s3 + $0x160] sm:$0xff]
    %v258 = vld [vmem:[%s3 + $0x168] sm:$0xff]
    %v259 = vld [vmem:[%s3 + $0x170] sm:$0xff]
    %v260 = vld [vmem:[%s3 + $0x178] sm:$0xff]
    %v261 = vld [vmem:[%s3 + $0x180] sm:$0xff]
    %v262 = vld [vmem:[%s3 + $0x188] sm:$0xff]
    %v263 = vld [vmem:[%s3 + $0x190] sm:$0xff]
    %v264 = vld [vmem:[%s3 + $0x198] sm:$0xff]
    %v265 = vld [vmem:[%s3 + $0x1a0] sm:$0xff]
    %v266 = vld [vmem:[%s3 + $0x1a8] sm:$0xff]
    %v267 = vld [vmem:[%s3 + $0x1b0] sm:$0xff]
    %v268 = vld [vmem:[%s3 + $0x1b8] sm:$0xff]
    %v269 = vld [vmem:[%s3 + $0x1c0] sm:$0xff]
    %v270 = vld [vmem:[%s3 + $0x1c8] sm:$0xff]
    %v271 = vld [vmem:[%s3 + $0x1d0] sm:$0xff]
    %v272 = vld [vmem:[%s3 + $0x1d8] sm:$0xff]
    %v273 = vld [vmem:[%s3 + $0x1e0] sm:$0xff]
    %v274 = vld [vmem:[%s3 + $0x1e8] sm:$0xff]
    %v275 = vld [vmem:[%s3 + $0x1f0] sm:$0xff]
    %v276 = vld [vmem:[%s3 + $0x1f8] sm:$0xff]
    %v277 = vld [vmem:[%s4] sm:$0x1]
    %v279 = vlaneseq
    %v280 = vshrl.u32 %v279, 7
    %v281 = vsub.s32 0, %v280
    %v282 = vrot.slane %v277, %v281
    %284 = vmatprep.subr.mxu0 0.0
    %285 = vmatpush1.msra.mxu0 %v228
    %286 = vmatprep.subr.mxu0 0.0
    %287 = vmatpush1.msra.mxu0 %v227
    %288 = vmatprep.subr.mxu0 0.0
    %289 = vmatpush1.msra.mxu0 %v226
    %290 = vmatprep.subr.mxu0 0.0
    %291 = vmatpush1.msra.mxu0 %v225
    %292 = vmatprep.subr.mxu0 0.0
    %293 = vmatpush1.msra.mxu0 %v224
    %294 = vmatprep.subr.mxu0 0.0
    %295 = vmatpush1.msra.mxu0 %v223
    %296 = vmatprep.subr.mxu0 0.0
    %297 = vmatpush1.msra.mxu0 %v222
    %298 = vmatprep.subr.mxu0 0.0
    %299 = vmatpush1.msra.mxu0 %v221
    %300 = vmatprep.subr.mxu0 0.0
    %301 = vmatpush1.msra.mxu0 %v220
    %302 = vmatprep.subr.mxu0 0.0
    %303 = vmatpush1.msra.mxu0 %v219
    %304 = vmatprep.subr.mxu0 0.0
    %305 = vmatpush1.msra.mxu0 %v218
    %306 = vmatprep.subr.mxu0 0.0
    %307 = vmatpush1.msra.mxu0 %v217
    %308 = vmatprep.subr.mxu0 0.0
    %309 = vmatpush1.msra.mxu0 %v216
    %310 = vmatprep.subr.mxu0 0.0
    %311 = vmatpush1.msra.mxu0 %v215
    %312 = vmatprep.subr.mxu0 0.0
    %313 = vmatpush1.msra.mxu0 %v214
    %314 = vmatprep.subr.mxu0 0.0
    %315 = vmatpush1.msra.mxu0 %v213
    %316 = vmatprep.subr.mxu0 0.0
    %317 = vmatpush2.msra.mxu0 %v244
    %318 = vmatprep.subr.mxu0 0.0
    %319 = vmatpush2.msra.mxu0 %v243
    %320 = vmatprep.subr.mxu0 0.0
    %321 = vmatpush2.msra.mxu0 %v242
    %322 = vmatprep.subr.mxu0 0.0
    %323 = vmatpush2.msra.mxu0 %v241
    %324 = vmatprep.subr.mxu0 0.0
    %325 = vmatpush2.msra.mxu0 %v240
    %326 = vmatprep.subr.mxu0 0.0
    %327 = vmatpush2.msra.mxu0 %v239
    %328 = vmatprep.subr.mxu0 0.0
    %329 = vmatpush2.msra.mxu0 %v238
    %330 = vmatprep.subr.mxu0 0.0
    %331 = vmatpush2.msra.mxu0 %v237
    %332 = vmatprep.subr.mxu0 0.0
    %333 = vmatpush2.msra.mxu0 %v236
    %334 = vmatprep.subr.mxu0 0.0
    %335 = vmatpush2.msra.mxu0 %v235
    %336 = vmatprep.subr.mxu0 0.0
    %337 = vmatpush2.msra.mxu0 %v234
    %338 = vmatprep.subr.mxu0 0.0
    %339 = vmatpush2.msra.mxu0 %v233
    %340 = vmatprep.subr.mxu0 0.0
    %341 = vmatpush2.msra.mxu0 %v232
    %342 = vmatprep.subr.mxu0 0.0
    %343 = vmatpush2.msra.mxu0 %v231
    %344 = vmatprep.subr.mxu0 0.0
    %345 = vmatpush2.msra.mxu0 %v230
    %346 = vmatprep.subr.mxu0 0.0
    %347 = vmatpush2.msra.mxu0 %v229
    %348 = vmatprep.mubr.f32.mxu0 %v210
    %349 = vmatmul.mubr.f32.gmra.mxu0 %v209
    %v350 = vpop.f32.mrf.mxu0
    %v351 = vadd.f32 %v282, %v350
    %v352 = vpop.f32.mrf.mxu0
    %353 = vdwg.mxu0
    %354 = vmatprep.subr.mxu0 0.0
    %355 = vmatpush1.msra.mxu0 %v260
    %356 = vmatprep.subr.mxu0 0.0
    %357 = vmatpush1.msra.mxu0 %v259
    %358 = vmatprep.subr.mxu0 0.0
    %359 = vmatpush1.msra.mxu0 %v258
    %360 = vmatprep.subr.mxu0 0.0
    %361 = vmatpush1.msra.mxu0 %v257
    %362 = vmatprep.subr.mxu0 0.0
    %363 = vmatpush1.msra.mxu0 %v256
    %364 = vmatprep.subr.mxu0 0.0
    %365 = vmatpush1.msra.mxu0 %v255
    %366 = vmatprep.subr.mxu0 0.0
    %367 = vmatpush1.msra.mxu0 %v254
    %368 = vmatprep.subr.mxu0 0.0
    %369 = vmatpush1.msra.mxu0 %v253
    %370 = vmatprep.subr.mxu0 0.0
    %371 = vmatpush1.msra.mxu0 %v252
    %372 = vmatprep.subr.mxu0 0.0
    %373 = vmatpush1.msra.mxu0 %v251
    %374 = vmatprep.subr.mxu0 0.0
    %375 = vmatpush1.msra.mxu0 %v250
    %376 = vmatprep.subr.mxu0 0.0
    %377 = vmatpush1.msra.mxu0 %v249
    %378 = vmatprep.subr.mxu0 0.0
    %379 = vmatpush1.msra.mxu0 %v248
    %380 = vmatprep.subr.mxu0 0.0
    %381 = vmatpush1.msra.mxu0 %v247
    %382 = vmatprep.subr.mxu0 0.0
    %383 = vmatpush1.msra.mxu0 %v246
    %384 = vmatprep.subr.mxu0 0.0
    %385 = vmatpush1.msra.mxu0 %v245
    %386 = vmatprep.subr.mxu0 0.0
    %387 = vmatpush2.msra.mxu0 %v276
    %388 = vmatprep.subr.mxu0 0.0
    %389 = vmatpush2.msra.mxu0 %v275
    %390 = vmatprep.subr.mxu0 0.0
    %391 = vmatpush2.msra.mxu0 %v274
    %392 = vmatprep.subr.mxu0 0.0
    %393 = vmatpush2.msra.mxu0 %v273
    %394 = vmatprep.subr.mxu0 0.0
    %395 = vmatpush2.msra.mxu0 %v272
    %396 = vmatprep.subr.mxu0 0.0
    %397 = vmatpush2.msra.mxu0 %v271
    %398 = vmatprep.subr.mxu0 0.0
    %399 = vmatpush2.msra.mxu0 %v270
    %400 = vmatprep.subr.mxu0 0.0
    %401 = vmatpush2.msra.mxu0 %v269
    %402 = vmatprep.subr.mxu0 0.0
    %403 = vmatpush2.msra.mxu0 %v268
    %404 = vmatprep.subr.mxu0 0.0
    %405 = vmatpush2.msra.mxu0 %v267
    %406 = vmatprep.subr.mxu0 0.0
    %407 = vmatpush2.msra.mxu0 %v266
    %408 = vmatprep.subr.mxu0 0.0
    %409 = vmatpush2.msra.mxu0 %v265
    %410 = vmatprep.subr.mxu0 0.0
    %411 = vmatpush2.msra.mxu0 %v264
    %412 = vmatprep.subr.mxu0 0.0
    %413 = vmatpush2.msra.mxu0 %v263
    %414 = vmatprep.subr.mxu0 0.0
    %415 = vmatpush2.msra.mxu0 %v262
    %416 = vmatprep.subr.mxu0 0.0
    %417 = vmatpush2.msra.mxu0 %v261
    %418 = vmatprep.mubr.f32.mxu0 %v212
    %419 = vmatmul.mubr.f32.gmra.mxu0 %v211
    %v420 = vpop.f32.mrf.mxu0
    %v421 = vadd.f32 %v351, %v420
    %v422 = vpop.f32.mrf.mxu0
    %423 = vdwg.mxu0
    %v424 = vmul.f32 %v421, 0.5
    %v425 = vmul.f32 %v424, 1.442695
    %v426 = vpow.pop %v425
    %v427 = vld [vmem:[%s5] sm:$0xff]
    %429 = vrot.lane.b32.xlu0 %v426, 112
    %v430 = vpop.permute.xlu0 %429
    %v432 = vmul.f32 %v427, %v430
    %v433 = vadd.f32 %v432, %v421
    %435 = vrot.lane.b32.xlu0 %v433, 32
    %v436 = vpop.permute.xlu0 %435
    %v438 = vsel %vm63, %v421, %v436
    %vm439 = vcmask 392192
    %440 = vst.msk [vmem:[#allocation2] sm:$0xff] %vm439, %v438
    // Predicated region
    $region26: #{tpu_custom_call.1} parent=1 // pred_check
      _
    $region27: #{tpu_custom_call.1} parent=1 // pred_check_branch
      %442 = sbr.rel (0) target = $region29
    $region28: #{tpu_custom_call.1} parent=1 // pred_region
      %s444 = ssub.s32 128, 128
      %445 = vsyncadd [#allocation3], %s444
      %s447 = sshll.u32 [#allocation2], 4
      %s448 = int_to_ptr.vmem [resolvable:$true] %s447
      %450 = dma.vmem_to_hbm [thread:$0]  %s448, 128, %s6, [#allocation3]
    $region29: #{tpu_custom_call.1} parent=1 // pred_fallthru
      _
    // Predicated region
    $region30: #{tpu_custom_call.1} parent=1 // pred_check
      _
    $region31: #{tpu_custom_call.1} parent=1 // pred_check_branch
      %452 = sbr.rel (0) target = $region33
    $region32: #{tpu_custom_call.1} parent=1 // pred_region
      %453 = dma.done [#allocation3], 128
    $region33: #{tpu_custom_call.1} parent=1 // pred_fallthru
      _
    %454 = vsyncpa [#allocation3], 1

</llo_original>
